<compile_context>
chip_gen: v6e
topology: v6e:2x2x1
jax: 0.10.0
libtpu: 0.0.40
codegen_flags: <defaults>
</compile_context>

<pallas_src>
import functools
import numpy as np
import jax
import jax.numpy as jnp
from jax.experimental import pallas as pl
from jax.experimental.pallas import tpu as pltpu

BIT = 8
QUANT_MIN = 0
QUANT_MAX = 2 ** BIT - 1
F32_EPS = float(np.finfo(np.float32).eps)

LANE = 128
MIN_PIPELINE_BLOCKS = 8   # >= 4 blocks per TC on a 2-core chip -> pipelined + balanced

# True  -> x / s (bit-exact with torch's round(x/scale)).
# False -> x * (1/s) with the exact scalar reciprocal computed once per block
#          (keeps bf16 inputs purely HBM-bound on v7x; may flip exact ties).
BIT_EXACT_DIV = True


def _round_up(v, m):
    return ((v + m - 1) // m) * m


@functools.lru_cache(maxsize=None)
def _device_block_config():
    """(target_block_bytes, vmem_limit_bytes) tuned per TPU generation."""
    kind = ""
    try:
        kind = jax.devices()[0].device_kind.lower()
    except Exception:
        pass
    if "v5" in kind:
        # v5e: 16 MiB default scoped VMEM -> keep the 4 double-buffers <= ~12 MiB.
        return 3 * 1024 * 1024, None
    if "v6" in kind:
        # v6e: 1.3-1.4 TB/s HBM; larger blocks cut per-step overhead to ~5%.
        return 6 * 1024 * 1024, 48 * 1024 * 1024
    if "v7" in kind or "7x" in kind:
        # v7x: only 64 MiB physical VMEM (shared headroom), stay under 32 MiB scoped.
        return 4 * 1024 * 1024, None
    return 2 * 1024 * 1024, None


def _sublane_multiple(dtype):
    # Native packed-tile row multiple: 8 (4-byte) / 16 (2-byte) / 32 (1-byte).
    return max(8, 32 // jnp.dtype(dtype).itemsize)


def _lsq_fake_quant_kernel(scale_ref, zp_ref, x_ref, o_ref):
    # scale preprocessing (scale.data.abs_().clamp_(min=eps)) on the SMEM scalar.
    s = jnp.maximum(jnp.abs(scale_ref[0]), F32_EPS)
    zp = zp_ref[0].astype(jnp.float32)
    x = x_ref[...].astype(jnp.float32)
    if BIT_EXACT_DIV:
        x_over_s = x / s                      # bit-exact with torch round(x/scale)
    else:
        x_over_s = x * (1.0 / s)              # scalar recip once per block, vector mul
    x_int = jnp.round(x_over_s) + zp          # round_ste fwd value == round (half-to-even)
    x_quant = jnp.clip(x_int, float(QUANT_MIN), float(QUANT_MAX))
    o_ref[...] = ((x_quant - zp) * s).astype(o_ref.dtype)


_CHOSEN_SEMANTICS = None   # cached first dimension_semantics that lowers cleanly


def _semantics_candidates():
    cands = []
    core_par = getattr(pltpu, "CORE_PARALLEL", None)
    if core_par is not None:
        cands.append((core_par,))      # actually splits blocks across v7x's 2 TCs
    cands.append(("parallel",))        # portable fallback (no-op on 1-TC chips)
    return cands


def _run_tiled(x2d, scale, zero_point):
    """Streamed, pipelined kernel over a lane-dense (rows, 128) slab."""
    global _CHOSEN_SEMANTICS
    rows, lane = x2d.shape
    itemsize = jnp.dtype(x2d.dtype).itemsize
    sub = _sublane_multiple(x2d.dtype)
    target_bytes, vmem_limit = _device_block_config()

    if rows <= sub:
        tm = rows                                   # one tiny block == full array dims
    else:
        # Largest block that keeps 2-in + 2-out double buffers inside scoped VMEM.
        max_tm = max(sub, (target_bytes // (lane * itemsize)) // sub * sub)
        # Guarantee pipeline depth / 2-TC balance: aim for >= MIN_PIPELINE_BLOCKS
        # blocks (even count) before hitting the per-generation block-size cap.
        nblk = max(MIN_PIPELINE_BLOCKS, pl.cdiv(rows, max_tm))
        nblk = _round_up(nblk, 2)
        tm = max(sub, min(max_tm, _round_up(pl.cdiv(rows, nblk), sub)))
    grid = (pl.cdiv(rows, tm),)

    n = rows * lane
    cost = pl.CostEstimate(flops=7 * n, transcendentals=0,
                           bytes_accessed=2 * n * itemsize)

    def call(dim_sem):
        return pl.pallas_call(
            _lsq_fake_quant_kernel,
            out_shape=jax.ShapeDtypeStruct((rows, lane), x2d.dtype),
            grid=grid,
            in_specs=[
                pl.BlockSpec(memory_space=pltpu.SMEM),      # scale, shape (1,) f32
                pl.BlockSpec(memory_space=pltpu.SMEM),      # zero_point, shape (1,) i32
                pl.BlockSpec((tm, lane), lambda i: (i, 0)),
            ],
            out_specs=pl.BlockSpec((tm, lane), lambda i: (i, 0)),
            compiler_params=pltpu.CompilerParams(
                dimension_semantics=dim_sem,
                vmem_limit_bytes=vmem_limit,
            ),
            cost_estimate=cost,
        )(scale, zero_point, x2d)

    candidates = _semantics_candidates()
    if _CHOSEN_SEMANTICS is not None:
        candidates = [_CHOSEN_SEMANTICS] + [c for c in candidates if c != _CHOSEN_SEMANTICS]

    last_err = None
    for sem in candidates:
        try:
            out = jax.block_until_ready(call(sem))
            _CHOSEN_SEMANTICS = sem
            return out
        except Exception as e:   # e.g. CORE_PARALLEL rejected by an older lowering
            last_err = e
    raise last_err


def _fake_quant_jnp(x_flat, scale, zero_point):
    """Plain-jnp path for the tiny (<128 element) ragged tail."""
    s = jnp.maximum(jnp.abs(scale[0].astype(jnp.float32)), F32_EPS)
    zp = zero_point[0].astype(jnp.float32)
    xi = jnp.round(x_flat.astype(jnp.float32) / s) + zp
    xq = jnp.clip(xi, float(QUANT_MIN), float(QUANT_MAX))
    return ((xq - zp) * s).astype(x_flat.dtype)


def lsq_fake_quantize(x, scale, zero_point):
    """Per-tensor LSQ fake quantization (LSQFakeQuantize.forward default path).

    Note: torch mutates `scale` in place (abs_().clamp_(eps)); here the clamped
    value is used internally but the caller's scale array is left untouched.
    """
    orig_shape = x.shape
    n = x.size
    if n == 0:
        return x
    xf = x.reshape(-1)
    n_main = (n // LANE) * LANE
    tail = n - n_main

    if tail == 0:
        # Common case: pure reshape, no pad / slice / concat HBM copies.
        out2d = _run_tiled(xf.reshape(n_main // LANE, LANE), scale, zero_point)
        return out2d.reshape(orig_shape)

    # TODO(synk): the ragged (<128-element tail) path still pays one extra
    # full-tensor slice + concat; a fully copy-free version needs a manual
    # pl.ANY HBM-DMA path, which is not worth it since conv/linear activations
    # are lane-aligned in practice.
    parts = []
    if n_main > 0:
        out2d = _run_tiled(xf[:n_main].reshape(n_main // LANE, LANE), scale, zero_point)
        parts.append(out2d.reshape(-1))
    parts.append(_fake_quant_jnp(xf[n_main:], scale, zero_point))
    return jnp.concatenate(parts).reshape(orig_shape)


def _reference(x, scale, zero_point):
    s = np.maximum(np.abs(np.asarray(scale, np.float32)[0]), F32_EPS)
    zp = float(np.asarray(zero_point)[0])
    xi = np.round(np.asarray(x, np.float32) / s) + zp
    xq = np.clip(xi, QUANT_MIN, QUANT_MAX)
    return ((xq - zp) * s).astype(np.float32)


if __name__ == "__main__":
    key = jax.random.PRNGKey(0)
    # NCHW input, consistent with how this fake-quant module wraps conv activations.
    x = jax.random.normal(key, (2, 4, 16, 16), dtype=jnp.float32) * 3.0

    # Module __init__: scale=[1.0], zero_point=[0]; use non-trivial values to
    # exercise the math.
    scale = jnp.array([0.05], dtype=jnp.float32)
    zero_point = jnp.array([7], dtype=jnp.int32)

    y = jax.block_until_ready(lsq_fake_quantize(x, scale, zero_point))
    np.testing.assert_allclose(
        np.asarray(y),
        _reference(np.asarray(x), np.asarray(scale), np.asarray(zero_point)),
        rtol=1e-6, atol=1e-6)

    # Ragged-size path (numel not a multiple of 128): kernel prefix + jnp tail.
    x2 = jax.random.normal(jax.random.PRNGKey(1), (3, 5, 11), dtype=jnp.float32) * 3.0
    y2 = jax.block_until_ready(lsq_fake_quantize(x2, scale, zero_point))
    np.testing.assert_allclose(
        np.asarray(y2),
        _reference(np.asarray(x2), np.asarray(scale), np.asarray(zero_point)),
        rtol=1e-6, atol=1e-6)

    # bf16 activations: dtype-preserving I/O, 16-row sublane tiles.
    x3 = (jax.random.normal(jax.random.PRNGKey(2), (2, 4, 16, 16),
                            dtype=jnp.float32) * 3.0).astype(jnp.bfloat16)
    y3 = jax.block_until_ready(lsq_fake_quantize(x3, scale, zero_point))
    ref3 = _reference(np.asarray(jnp.asarray(x3, jnp.float32)),
                      np.asarray(scale), np.asarray(zero_point))
    np.testing.assert_allclose(np.asarray(y3.astype(jnp.float32)), ref3,
                               rtol=1e-2, atol=0.05)

    # TODO(synk): observer (min/max calibration), drop_prob<1 stochastic mix, the
    # per-channel (ch_axis != -1) branch, and the in-place write-back of the
    # clamped scale parameter are not implemented (module defaults disable them).

    print("KERNEL_OK")
</pallas_src>

<mosaic_0001>
module attributes {stable_mosaic.version = 11 : i64} {
  func.func @_lsq_fake_quant_kernel(%arg0: i32, %arg1: memref<1xf32, #tpu.memory_space<smem>>, %arg2: memref<1xi32, #tpu.memory_space<smem>>, %arg3: memref<8x128xf32, #tpu.memory_space<vmem>>, %arg4: memref<8x128xf32, #tpu.memory_space<vmem>>) attributes {dimension_semantics = [#tpu.dimension_semantics<core_parallel>], iteration_bounds = array<i64: 2>, scalar_prefetch = 0 : i64, scratch_operands = 0 : i64, tpu.core_type = #tpu.core_type<tc>, window_params = [{transform_indices = @transform_0, window_bounds = array<i64: 1>}, {transform_indices = @transform_1, window_bounds = array<i64: 1>}, {transform_indices = @transform_2, window_bounds = array<i64: 8, 128>}, {transform_indices = @transform_3, window_bounds = array<i64: 8, 128>}]} {
    %c0 = arith.constant 0 : index
    %0 = memref.load %arg1[%c0] : memref<1xf32, #tpu.memory_space<smem>>
    %1 = math.absf %0 : f32
    %cst = arith.constant 1.1920929E-7 : f32
    %2 = arith.maximumf %1, %cst : f32
    %c0_0 = arith.constant 0 : index
    %3 = memref.load %arg2[%c0_0] : memref<1xi32, #tpu.memory_space<smem>>
    %4 = arith.sitofp %3 : i32 to f32
    %c0_1 = arith.constant 0 : index
    %c0_2 = arith.constant 0 : index
    %5 = vector.load %arg3[%c0_1, %c0_2] : memref<8x128xf32, #tpu.memory_space<vmem>>, vector<8x128xf32>
    %6 = vector.broadcast %2 : f32 to vector<8x128xf32>
    %7 = arith.divf %5, %6 : vector<8x128xf32>
    %8 = math.roundeven %7 : vector<8x128xf32>
    %9 = vector.broadcast %4 : f32 to vector<8x128xf32>
    %10 = arith.addf %8, %9 : vector<8x128xf32>
    %cst_3 = arith.constant 0.000000e+00 : f32
    %cst_4 = arith.constant 2.550000e+02 : f32
    %11 = vector.broadcast %cst_3 : f32 to vector<8x128xf32>
    %12 = arith.maximumf %11, %10 : vector<8x128xf32>
    %13 = vector.broadcast %cst_4 : f32 to vector<8x128xf32>
    %14 = arith.minimumf %13, %12 : vector<8x128xf32>
    %15 = vector.broadcast %4 : f32 to vector<8x128xf32>
    %16 = arith.subf %14, %15 : vector<8x128xf32>
    %17 = vector.broadcast %2 : f32 to vector<8x128xf32>
    %18 = arith.mulf %16, %17 : vector<8x128xf32>
    %c0_5 = arith.constant 0 : index
    %c0_6 = arith.constant 0 : index
    %19 = vector.load %arg4[%c0_5, %c0_6] : memref<8x128xf32, #tpu.memory_space<vmem>>, vector<8x128xf32>
    tpu.vector_store %arg4[%c0_5, %c0_6], %18 {strides = array<i32>} : memref<8x128xf32, #tpu.memory_space<vmem>>, vector<8x128xf32>,
    return
  }
  func.func @transform_0(%arg0: i32) -> i32 {
    %c0_i32 = arith.constant 0 : i32
    %c0_i32_0 = arith.constant 0 : i32
    return %c0_i32 : i32
  }
  func.func @transform_1(%arg0: i32) -> i32 {
    %c0_i32 = arith.constant 0 : i32
    %c0_i32_0 = arith.constant 0 : i32
    return %c0_i32 : i32
  }
  func.func @transform_2(%arg0: i32) -> (i32, i32) {
    %c0_i32 = arith.constant 0 : i32
    %c0_i32_0 = arith.constant 0 : i32
    return %arg0, %c0_i32 : i32, i32
  }
  func.func @transform_3(%arg0: i32) -> (i32, i32) {
    %c0_i32 = arith.constant 0 : i32
    %c0_i32_0 = arith.constant 0 : i32
    return %arg0, %c0_i32 : i32, i32
  }
}

module attributes {stable_mosaic.version = 11 : i64} {
  func.func @_lsq_fake_quant_kernel(%arg0: i32, %arg1: memref<1xf32, #tpu.memory_space<smem>>, %arg2: memref<1xi32, #tpu.memory_space<smem>>, %arg3: memref<8x128xf32, #tpu.memory_space<vmem>>, %arg4: memref<8x128xf32, #tpu.memory_space<vmem>>) attributes {dimension_semantics = [#tpu.dimension_semantics<parallel>], iteration_bounds = array<i64: 2>, scalar_prefetch = 0 : i64, scratch_operands = 0 : i64, tpu.core_type = #tpu.core_type<tc>, window_params = [{transform_indices = @transform_0, window_bounds = array<i64: 1>}, {transform_indices = @transform_1, window_bounds = array<i64: 1>}, {transform_indices = @transform_2, window_bounds = array<i64: 8, 128>}, {transform_indices = @transform_3, window_bounds = array<i64: 8, 128>}]} {
    %c0 = arith.constant 0 : index
    %0 = memref.load %arg1[%c0] : memref<1xf32, #tpu.memory_space<smem>>
    %1 = math.absf %0 : f32
    %cst = arith.constant 1.1920929E-7 : f32
    %2 = arith.maximumf %1, %cst : f32
    %c0_0 = arith.constant 0 : index
    %3 = memref.load %arg2[%c0_0] : memref<1xi32, #tpu.memory_space<smem>>
    %4 = arith.sitofp %3 : i32 to f32
    %c0_1 = arith.constant 0 : index
    %c0_2 = arith.constant 0 : index
    %5 = vector.load %arg3[%c0_1, %c0_2] : memref<8x128xf32, #tpu.memory_space<vmem>>, vector<8x128xf32>
    %6 = vector.broadcast %2 : f32 to vector<8x128xf32>
    %7 = arith.divf %5, %6 : vector<8x128xf32>
    %8 = math.roundeven %7 : vector<8x128xf32>
    %9 = vector.broadcast %4 : f32 to vector<8x128xf32>
    %10 = arith.addf %8, %9 : vector<8x128xf32>
    %cst_3 = arith.constant 0.000000e+00 : f32
    %cst_4 = arith.constant 2.550000e+02 : f32
    %11 = vector.broadcast %cst_3 : f32 to vector<8x128xf32>
    %12 = arith.maximumf %11, %10 : vector<8x128xf32>
    %13 = vector.broadcast %cst_4 : f32 to vector<8x128xf32>
    %14 = arith.minimumf %13, %12 : vector<8x128xf32>
    %15 = vector.broadcast %4 : f32 to vector<8x128xf32>
    %16 = arith.subf %14, %15 : vector<8x128xf32>
    %17 = vector.broadcast %2 : f32 to vector<8x128xf32>
    %18 = arith.mulf %16, %17 : vector<8x128xf32>
    %c0_5 = arith.constant 0 : index
    %c0_6 = arith.constant 0 : index
    %19 = vector.load %arg4[%c0_5, %c0_6] : memref<8x128xf32, #tpu.memory_space<vmem>>, vector<8x128xf32>
    tpu.vector_store %arg4[%c0_5, %c0_6], %18 {strides = array<i32>} : memref<8x128xf32, #tpu.memory_space<vmem>>, vector<8x128xf32>,
    return
  }
  func.func @transform_0(%arg0: i32) -> i32 {
    %c0_i32 = arith.constant 0 : i32
    %c0_i32_0 = arith.constant 0 : i32
    return %c0_i32 : i32
  }
  func.func @transform_1(%arg0: i32) -> i32 {
    %c0_i32 = arith.constant 0 : i32
    %c0_i32_0 = arith.constant 0 : i32
    return %c0_i32 : i32
  }
  func.func @transform_2(%arg0: i32) -> (i32, i32) {
    %c0_i32 = arith.constant 0 : i32
    %c0_i32_0 = arith.constant 0 : i32
    return %arg0, %c0_i32 : i32, i32
  }
  func.func @transform_3(%arg0: i32) -> (i32, i32) {
    %c0_i32 = arith.constant 0 : i32
    %c0_i32_0 = arith.constant 0 : i32
    return %arg0, %c0_i32 : i32, i32
  }
}

</mosaic_0001>

<llo_original>
// kernel: tpu_custom_call.1
$region0: #{tpu_custom_call.1}
  #allocation0 [shape = 'u32[]', space=smem, size = 0x4, offset = 0x4, fixed_abs, tag = 'smem constant byte address 0x4 - core index']
  #allocation1 [shape = 'u32[144,128]{1,0:T(1,128)}', space=vmem, size = 0x12000, scoped, tag = 'internal scratch']
  #allocation2 [shape = 'f32[1]{0:T(128)S(6)}', space=smem, size = 0x200, scoped, tag = 'scoped memory for tpu_custom_call.1']
  #allocation3 [shape = 's32[1]{0:T(128)S(6)}', space=smem, size = 0x200, scoped, tag = 'scoped memory for tpu_custom_call.1']
  %s0 = inlined_call_operand.<no memory space> [shape: f32[1], index: 0, kind: input, shape index: {}]
  %s1 = inlined_call_operand.<no memory space> [shape: s32[1], index: 1, kind: input, shape index: {}]
  %s2 = inlined_call_operand.hbm [shape: f32[16,128], index: 2, kind: input, shape index: {}]
  %s3 = inlined_call_operand.hbm [shape: f32[16,128], index: 3, kind: output, shape index: {}]
  %s4 = sld [smem:[#allocation0]]
  $region49: #{tpu_custom_call.1} parent=0
    _
  %s6 = ssub.s32 1, %s4
  %s7 = scalar_select 0, %s6, %s4
  %8 = sst [smem:[#allocation2]] %s0
  %9 = sst [smem:[#allocation3]] %s1
  $region1: #{tpu_custom_call.1} parent=0
    #allocation4 [shape = 'u8[8192]{0}', space=vmem, size = 0x2000, scoped, tag = 'input window, operand 2']
    #allocation5 [shape = 's32[2]{0}', space=sflag, size = 0x8, scoped, tag = 'scoped memory for tpu_custom_call.1']
    #allocation6 [shape = 's32[2]{0}', space=sflag, size = 0x8, scoped, tag = 'scoped memory for tpu_custom_call.1']
    #allocation7 [shape = 'u8[8192]{0}', space=vmem, size = 0x2000, scoped, tag = 'output window, operand 0']
    %10 = vsyncpa [#allocation5], 0
    %s11 = scalar_lea.sflag [#allocation5], 1
    %12 = vsyncpa %s11, 0
    %13 = vsyncpa [#allocation6], 0
    %s14 = scalar_lea.sflag [#allocation6], 1
    %15 = vsyncpa %s14, 0
    loop: start=0, step=1, limit=4
    $region2: #{tpu_custom_call.1} parent=1 // loop_pre_header
      _
    $region3: #{tpu_custom_call.1} parent=1 // loop_header
      %s17 = sphi 0, %s21
      %p18 = scmp.ge.s32.totalorder %s17, 4
      %s25 = sphi 0, %s25
      %s27 = sphi 0, %s25
      %s28 = sphi 0, %s27
      %s42 = sphi 0, %s28
      %s46 = sphi 0, %s46
      %s48 = sphi 0, %s46
      %s49 = sphi 0, %s48
      %s63 = sphi 0, %s49
      %s69 = sphi 0, %s71
      %s72 = sphi 0, %s69
      %s73 = sphi 0, %s72
      %s89 = sphi 0, %s73
      %s95 = sphi 0, %s97
      %s98 = sphi 0, %s95
      %s99 = sphi 0, %s98
      %s115 = sphi 0, %s99
    $region4: #{tpu_custom_call.1} parent=1 // loop_header_branch
      %20 = sbr.rel (%p18) target = $region8
    $region5: #{tpu_custom_call.1} parent=1 // loop_body
      %s22 = ssub.s32 %s17, 1
      %s23 = ssub.s32 %s17, 2
      %s24 = sadd.s32 %s17, 1
      %s26 = sadd.s32 %s25, 1
      %p29 = scmp.eq.s32.totalorder %s17, 1
      %p30 = scmp.ne.s32.totalorder %s25, %s27
      %p31 = scmp.eq.s32.totalorder %s17, 0
      %p32 = por %p30, %p31
      %p33 = scmp.ne.s32.totalorder %s25, %s27
      %p34 = scmp.eq.s32.totalorder %s22, 1
      %p35 = por %p33, %p34
      %p36 = scmp.ne.s32.totalorder %s27, %s28
      %p37 = scmp.eq.s32.totalorder %s22, 0
      %p38 = por %p36, %p37
      %p39 = scmp.ne.s32.totalorder %s27, %s28
      %p40 = scmp.eq.s32.totalorder %s23, 1
      %p41 = por %p39, %p40
      %p43 = scmp.ne.s32.totalorder %s28, %s42
      %p44 = scmp.eq.s32.totalorder %s23, 0
      %p45 = por %p43, %p44
      %s47 = sadd.s32 %s46, 1
      %p50 = scmp.eq.s32.totalorder %s17, 1
      %p51 = scmp.ne.s32.totalorder %s46, %s48
      %p52 = scmp.eq.s32.totalorder %s17, 0
      %p53 = por %p51, %p52
      %p54 = scmp.ne.s32.totalorder %s46, %s48
      %p55 = scmp.eq.s32.totalorder %s22, 1
      %p56 = por %p54, %p55
      %p57 = scmp.ne.s32.totalorder %s48, %s49
      %p58 = scmp.eq.s32.totalorder %s22, 0
      %p59 = por %p57, %p58
      %p60 = scmp.ne.s32.totalorder %s48, %s49
      %p61 = scmp.eq.s32.totalorder %s23, 1
      %p62 = por %p60, %p61
      %p64 = scmp.ne.s32.totalorder %s49, %s63
      %p65 = scmp.eq.s32.totalorder %s23, 0
      %p66 = por %p64, %p65
      %s67 = ssub.s32 %s17, %s24
      %p68 = scmp.eq.s32.totalorder %s67, 0
      %s70 = sadd.s32 %s69, 1
      %s71 = scalar_select %p68, %s69, %s70
      %p74 = pneg %p68
      %p75 = scmp.eq.s32.totalorder %s17, 1
      %p76 = por %p74, %p75
      %p77 = scmp.ne.s32.totalorder %s69, %s72
      %p78 = scmp.eq.s32.totalorder %s17, 0
      %p79 = por %p77, %p78
      %p80 = scmp.ne.s32.totalorder %s69, %s72
      %p81 = scmp.eq.s32.totalorder %s22, 1
      %p82 = por %p80, %p81
      %p83 = scmp.ne.s32.totalorder %s72, %s73
      %p84 = scmp.eq.s32.totalorder %s22, 0
      %p85 = por %p83, %p84
      %p86 = scmp.ne.s32.totalorder %s72, %s73
      %p87 = scmp.eq.s32.totalorder %s23, 1
      %p88 = por %p86, %p87
      %p90 = scmp.ne.s32.totalorder %s73, %s89
      %p91 = scmp.eq.s32.totalorder %s23, 0
      %p92 = por %p90, %p91
      %s93 = ssub.s32 %s17, %s24
      %p94 = scmp.eq.s32.totalorder %s93, 0
      %s96 = sadd.s32 %s95, 1
      %s97 = scalar_select %p94, %s95, %s96
      %p100 = pneg %p94
      %p101 = scmp.eq.s32.totalorder %s17, 1
      %p102 = por %p100, %p101
      %p103 = scmp.ne.s32.totalorder %s95, %s98
      %p104 = scmp.eq.s32.totalorder %s17, 0
      %p105 = por %p103, %p104
      %p106 = scmp.ne.s32.totalorder %s95, %s98
      %p107 = scmp.eq.s32.totalorder %s22, 1
      %p108 = por %p106, %p107
      %p109 = scmp.ne.s32.totalorder %s98, %s99
      %p110 = scmp.eq.s32.totalorder %s22, 0
      %p111 = por %p109, %p110
      %p112 = scmp.ne.s32.totalorder %s98, %s99
      %p113 = scmp.eq.s32.totalorder %s23, 1
      %p114 = por %p112, %p113
      %p116 = scmp.ne.s32.totalorder %s99, %s115
      %p117 = scmp.eq.s32.totalorder %s23, 0
      %p118 = por %p116, %p117
      %p119 = scmp.le.s32.totalorder 1, %s17
      %p120 = scmp.lt.s32.totalorder %s17, 3
      %p121 = pnand %p119, %p120
      %p122 = pneg %p121
      // Predicated region
      $region9: #{tpu_custom_call.1} parent=5 // pred_check
        _
      $region10: #{tpu_custom_call.1} parent=5 // pred_check_branch
        %124 = sbr.rel (%p121) target = $region12
      $region11: #{tpu_custom_call.1} parent=5 // pred_region
        %s125 = ssub.s32 %s17, 1
        // Predicated region
        $region13: #{tpu_custom_call.1} parent=11 // pred_check
          %p126 = pneg %p38
        $region14: #{tpu_custom_call.1} parent=11 // pred_check_branch
          %128 = sbr.rel (%p126) target = $region16
        $region15: #{tpu_custom_call.1} parent=11 // pred_region
          _
        $region16: #{tpu_custom_call.1} parent=11 // pred_fallthru
          _
        // Predicated region
        $region17: #{tpu_custom_call.1} parent=11 // pred_check
          %p129 = pneg %p59
        $region18: #{tpu_custom_call.1} parent=11 // pred_check_branch
          %131 = sbr.rel (%p129) target = $region20
        $region19: #{tpu_custom_call.1} parent=11 // pred_region
          _
        $region20: #{tpu_custom_call.1} parent=11 // pred_fallthru
          _
      $region12: #{tpu_custom_call.1} parent=5 // pred_fallthru
        _
      %p132 = scmp.lt.s32.totalorder %s17, 2
      // Predicated region
      $region21: #{tpu_custom_call.1} parent=5 // pred_check
        %p133 = pneg %p132
      $region22: #{tpu_custom_call.1} parent=5 // pred_check_branch
        %135 = sbr.rel (%p133) target = $region24
      $region23: #{tpu_custom_call.1} parent=5 // pred_region
        // Predicated region
        $region25: #{tpu_custom_call.1} parent=23 // pred_check
          %p136 = pneg %p79
        $region26: #{tpu_custom_call.1} parent=23 // pred_check_branch
          %138 = sbr.rel (%p136) target = $region28
        $region27: #{tpu_custom_call.1} parent=23 // pred_region
          %s139 = sand.u32 %s69, 1
          %s140 = scalar_lea.sflag [#allocation5], %s139
          %s141 = sand.u32 %s69, 1
          %s142 = smul.addr %s141, 8
          %s143 = scalar_lea.vmem [#allocation4], %s142
          %s145 = ssub.s32 128, 128
          %146 = vsyncadd %s140, %s145
          %s147 = smul.addr %s17, 128
          %s148 = scalar_lea.hbm %s2, %s147
          %s150 = sshll.u32 %s143, 4
          %s151 = int_to_ptr.vmem [resolvable:$true] %s150
          %153 = dma.hbm_to_vmem [thread:$0]  %s148, 128, %s151, %s140
        $region28: #{tpu_custom_call.1} parent=23 // pred_fallthru
          _
      $region24: #{tpu_custom_call.1} parent=5 // pred_fallthru
        _
      %p154 = scmp.le.s32.totalorder 1, %s17
      %p155 = scmp.lt.s32.totalorder %s17, 3
      %p156 = pnand %p154, %p155
      %p157 = pneg %p156
      // Predicated region
      $region29: #{tpu_custom_call.1} parent=5 // pred_check
        _
      $region30: #{tpu_custom_call.1} parent=5 // pred_check_branch
        %159 = sbr.rel (%p156) target = $region32
      $region31: #{tpu_custom_call.1} parent=5 // pred_region
        %s160 = ssub.s32 %s17, 1
        %s161 = sand.u32 %s72, 1
        %s162 = scalar_lea.sflag [#allocation5], %s161
        %s163 = sand.u32 %s72, 1
        %s164 = smul.addr %s163, 8
        %s165 = scalar_lea.vmem [#allocation4], %s164
        // Predicated region
        $region33: #{tpu_custom_call.1} parent=31 // pred_check
          %p166 = pneg %p85
        $region34: #{tpu_custom_call.1} parent=31 // pred_check_branch
          %168 = sbr.rel (%p166) target = $region36
        $region35: #{tpu_custom_call.1} parent=31 // pred_region
          %169 = dma.done %s162, 128
        $region36: #{tpu_custom_call.1} parent=31 // pred_fallthru
          _
        %p170 = pneg %p38
        %p171 = pneg %p35
        %p172 = pneg %p59
        %p173 = pneg %p56
        %s174 = sand.u32 %s72, 1
        %s175 = scalar_lea.sflag [#allocation5], %s174
        %s176 = sand.u32 %s72, 1
        %s177 = smul.addr %s176, 8
        %s178 = scalar_lea.vmem [#allocation4], %s177
        %p179 = pneg %p85
        %p180 = pneg %p82
        %p181 = pneg %p111
        %p182 = pneg %p108
        %s183 = sand.u32 %s98, 1
        %s184 = scalar_lea.sflag [#allocation6], %s183
        %s185 = sand.u32 %s98, 1
        %s186 = smul.addr %s185, 8
        %s187 = scalar_lea.vmem [#allocation7], %s186
        %s188 = sld [smem:[#allocation2]]
        %s189 = sand.u32 2147483647, %s188
        %s190 = smax.f32 %s189, 1.1920929e-07
        %s191 = sld [smem:[#allocation3]]
        %s192 = scvt.s32.f32 %s191
        %v193 = vld [vmem:[%s165] sm:$0xff]
        %v194 = vstv %s190
        %v195 = vrcp.pop %v194
        %v196 = vmul.f32 %v193, %v195
        %v197 = vround.ne.pseudo %v196
        %v198 = vstv %s192
        %v199 = vadd.f32 %v197, %v198
        %v200 = vmax.f32 %v199, 0.0
        %v201 = vmin.f32 %v200, 255.0
        %v202 = vsub.f32 %v201, %v198
        %v203 = vmul.f32 %v202, %v194
        %204 = vst [vmem:[%s187] sm:$0xff] %v203
        %s205 = sand.u32 %s98, 1
        %s206 = scalar_lea.sflag [#allocation6], %s205
        %s207 = sand.u32 %s98, 1
        %s208 = smul.addr %s207, 8
        %s209 = scalar_lea.vmem [#allocation7], %s208
        // Predicated region
        $region37: #{tpu_custom_call.1} parent=31 // pred_check
          %p210 = pneg %p108
        $region38: #{tpu_custom_call.1} parent=31 // pred_check_branch
          %212 = sbr.rel (%p210) target = $region40
        $region39: #{tpu_custom_call.1} parent=31 // pred_region
          %s214 = ssub.s32 128, 128
          %215 = vsyncadd %s206, %s214
          %s216 = smul.addr %s22, 128
          %s217 = scalar_lea.hbm %s3, %s216
          %s219 = sshll.u32 %s209, 4
          %s220 = int_to_ptr.vmem [resolvable:$true] %s219
          %222 = dma.vmem_to_hbm [thread:$0]  %s220, 128, %s217, %s206
        $region40: #{tpu_custom_call.1} parent=31 // pred_fallthru
          _
      $region32: #{tpu_custom_call.1} parent=5 // pred_fallthru
        _
      %p223 = scmp.le.s32.totalorder 2, %s17
      // Predicated region
      $region41: #{tpu_custom_call.1} parent=5 // pred_check
        %p224 = pneg %p223
      $region42: #{tpu_custom_call.1} parent=5 // pred_check_branch
        %226 = sbr.rel (%p224) target = $region44
      $region43: #{tpu_custom_call.1} parent=5 // pred_region
        %s227 = ssub.s32 %s17, 2
        // Predicated region
        $region45: #{tpu_custom_call.1} parent=43 // pred_check
          %p228 = pneg %p114
        $region46: #{tpu_custom_call.1} parent=43 // pred_check_branch
          %230 = sbr.rel (%p228) target = $region48
        $region47: #{tpu_custom_call.1} parent=43 // pred_region
          %s231 = sand.u32 %s99, 1
          %s232 = scalar_lea.sflag [#allocation6], %s231
          %s233 = sand.u32 %s99, 1
          %s234 = smul.addr %s233, 8
          %s235 = scalar_lea.vmem [#allocation7], %s234
          %236 = dma.done %s232, 128
        $region48: #{tpu_custom_call.1} parent=43 // pred_fallthru
          _
      $region44: #{tpu_custom_call.1} parent=5 // pred_fallthru
        _
    $region6: #{tpu_custom_call.1} parent=1 // loop_footer
      %s21 = sadd.s32 1, %s17
    $region7: #{tpu_custom_call.1} parent=1 // loop_footer_branch
      %16 = sbr.rel target = $region3
    $region8: #{tpu_custom_call.1} parent=1 // loop_exit
      _
    %237 = vsyncpa [#allocation5], 1
    %s238 = scalar_lea.sflag [#allocation5], 1
    %239 = vsyncpa %s238, 1
    %240 = vsyncpa [#allocation6], 1
    %s241 = scalar_lea.sflag [#allocation6], 1
    %242 = vsyncpa %s241, 1

</llo_original>
